<compile_context>
chip_gen: v7x
topology: tpu7x:2x2x1
jax: 0.10.0
libtpu: 0.0.40
codegen_flags: <defaults>
</compile_context>

<pallas_src>
import functools

import jax
import jax.numpy as jnp
from jax.experimental import pallas as pl
from jax.experimental.pallas import tpu as pltpu


# --------------------------------------------------------------------------
# Kernel 1: build_mips — 2x2 average pool of the cubemap.
# --------------------------------------------------------------------------
@functools.lru_cache(maxsize=None)
def _pool_h_matrix(h):
    """(H/2, H): averages adjacent row pairs.  Built once per resolution."""
    row = jnp.arange(h // 2)[:, None]
    col = jnp.arange(h)[None, :]
    return jnp.where(col // 2 == row, 0.5, 0.0).astype(jnp.float32)


@functools.lru_cache(maxsize=None)
def _pool_w_matrix(w, c):
    """(W*C, (W/2)*C): averages adjacent pixel pairs in channel-interleaved lanes."""
    src = jnp.arange(w * c)
    dst = jnp.arange((w // 2) * c)
    same_ch = (src[:, None] % c) == (dst[None, :] % c)
    same_px = (src[:, None] // c) // 2 == (dst[None, :] // c)
    return jnp.where(same_ch & same_px, 0.5, 0.0).astype(jnp.float32)


def _build_mip_kernel(cube_ref, ph_ref, pw_ref, out_ref):
    x = cube_ref[0]                                                    # (H, W*C)
    y = jnp.dot(ph_ref[...], x, preferred_element_type=jnp.float32)    # (H/2, W*C)
    out_ref[0] = jnp.dot(y, pw_ref[...], preferred_element_type=jnp.float32)


def build_mips(cubemap):
    """cubemap: (6, H, W, C) float32 -> next mip level (6, H/2, W/2, C)."""
    faces, h, w, c = cubemap.shape
    wc = w * c
    x = cubemap.reshape(faces, h, wc).astype(jnp.float32)   # free view, no transpose
    ph = _pool_h_matrix(h)        # (h/2, h)   shared across faces (not replicated)
    pw = _pool_w_matrix(w, c)     # (wc, wc/2) shared across faces (not replicated)

    out = pl.pallas_call(
        _build_mip_kernel,
        out_shape=jax.ShapeDtypeStruct((faces, h // 2, wc // 2), jnp.float32),
        grid_spec=pltpu.PrefetchScalarGridSpec(
            num_scalar_prefetch=0,
            grid=(faces,),
            in_specs=[
                pl.BlockSpec((1, h, wc), lambda i: (i, 0, 0)),
                pl.BlockSpec((h // 2, h), lambda i: (0, 0)),
                pl.BlockSpec((wc, wc // 2), lambda i: (0, 0)),
            ],
            out_specs=pl.BlockSpec((1, h // 2, wc // 2), lambda i: (i, 0, 0)),
        ),
        compiler_params=pltpu.CompilerParams(
            dimension_semantics=("parallel",),
            vmem_limit_bytes=32 * 1024 * 1024,
        ),
    )(x, ph, pw)

    return out.reshape(faces, h // 2, w // 2, c)


# --------------------------------------------------------------------------
# Kernel 2: image loss — alpha composite + log-L1, tiled reduction.
# --------------------------------------------------------------------------
_N_LOSS_CORES = 2  # v7x has 2 TensorCores; harmless (purely sequential) on v5e/v6e.


@functools.lru_cache(maxsize=None)
def _chan_replicate(w, c):
    """(W, W*C) 0/1 matrix: alpha @ R replicates each pixel across C channels."""
    col = jnp.arange(w * c)[None, :]
    row = jnp.arange(w)[:, None]
    return (col // c == row).astype(jnp.float32)


def _image_loss_kernel(img_ref, alpha_ref, bg_ref, ref_ref, rep_ref,
                       out_ref, acc_ref, *, inv_n):
    i = pl.program_id(1)

    @pl.when(i == 0)
    def _():
        acc_ref[...] = jnp.zeros_like(acc_ref)

    # Replicate alpha (T, W) across the C interleaved channels -> (T, W*C) with
    # a constant matmul on the otherwise-idle MXU (no wrapper-side broadcast).
    a = jnp.dot(alpha_ref[...], rep_ref[...], preferred_element_type=jnp.float32)
    color = img_ref[...] * a + bg_ref[...] * (1.0 - a)          # alpha composite
    diff = jnp.abs(jnp.log(color + 1.0) - jnp.log(ref_ref[...] + 1.0))
    acc_ref[...] += diff                                        # pure VPU accumulate

    @pl.when(i == pl.num_programs(1) - 1)
    def _():
        s = jnp.sum(acc_ref[...]) * inv_n                       # one reduce per core
        out_ref[...] = jnp.full(out_ref.shape, s, jnp.float32)


def image_loss(shaded_rgb, alpha, background, ref_img, *, tile_rows=None):
    """All args (B, H, W, C|1) float32; returns scalar log-L1 loss."""
    b, h, w, c = shaded_rgb.shape
    rows, cols = b * h, w * c
    total = float(rows * cols)

    img2 = shaded_rgb.reshape(rows, cols).astype(jnp.float32)
    bg2 = background.reshape(rows, cols).astype(jnp.float32)
    ref2 = ref_img.reshape(rows, cols).astype(jnp.float32)
    a2 = alpha.reshape(rows, w).astype(jnp.float32)   # NOT broadcast across channels
    rep = _chan_replicate(w, c)

    if tile_rows is None:
        # ~3 MiB of fresh input per grid step (double-buffered ~6 MiB), well inside
        # the 16/32/32 MiB scoped-VMEM defaults of v5e/v6e/v7x while amortizing the
        # ~0.35 us per-grid-step overhead.
        bytes_per_row = 4 * (3 * cols + w)
        tile_rows = max(8, min(512, (3 * 1024 * 1024 // bytes_per_row) // 8 * 8))
        # Don't pad tiny images into oblivion: at most one tile per core.
        half_rows = max(8, pl.cdiv(rows, 2 * 8) * 8)
        tile_rows = min(tile_rows, half_rows)

    rows_pad = pl.cdiv(rows, _N_LOSS_CORES * tile_rows) * _N_LOSS_CORES * tile_rows
    pad = rows_pad - rows
    if pad:
        # Zero rows composite to zero on both sides of the log-L1 and therefore
        # contribute exactly 0 to the sum; inv_n uses the true element count.
        img2 = jnp.pad(img2, ((0, pad), (0, 0)))
        bg2 = jnp.pad(bg2, ((0, pad), (0, 0)))
        ref2 = jnp.pad(ref2, ((0, pad), (0, 0)))
        a2 = jnp.pad(a2, ((0, pad), (0, 0)))

    tiles_per_core = rows_pad // (_N_LOSS_CORES * tile_rows)

    def row_map(p, i):
        return (p * tiles_per_core + i, 0)

    img_spec = pl.BlockSpec((tile_rows, cols), row_map)
    alpha_spec = pl.BlockSpec((tile_rows, w), row_map)
    rep_spec = pl.BlockSpec((w, cols), lambda p, i: (0, 0))

    out = pl.pallas_call(
        functools.partial(_image_loss_kernel, inv_n=1.0 / total),
        out_shape=jax.ShapeDtypeStruct((_N_LOSS_CORES, 8, 128), jnp.float32),
        grid_spec=pltpu.PrefetchScalarGridSpec(
            num_scalar_prefetch=0,
            grid=(_N_LOSS_CORES, tiles_per_core),
            in_specs=[img_spec, alpha_spec, img_spec, img_spec, rep_spec],
            out_specs=pl.BlockSpec((1, 8, 128), lambda p, i: (p, 0, 0)),
            scratch_shapes=[pltpu.VMEM((tile_rows, cols), jnp.float32)],
        ),
        compiler_params=pltpu.CompilerParams(
            dimension_semantics=("parallel", "arbitrary"),
            vmem_limit_bytes=32 * 1024 * 1024,
        ),
    )(img2, a2, bg2, ref2, rep)
    # Sum the per-core partials (each already scaled by 1/N).
    return jnp.sum(out[:, 0, 0])


# --------------------------------------------------------------------------
# Trainer analog (mirrors the PyTorch module's forward control flow).
# --------------------------------------------------------------------------
class Trainer:
    def __init__(self, light_cubemap, optimize_light, image_loss_fn, flags):
        self.light_cubemap = light_cubemap
        self.optimize_light = optimize_light
        self.image_loss_fn = image_loss_fn
        self.flags = flags
        self.light_mips = None
        if not self.flags["mc"] and not self.optimize_light:
            self.light_mips = build_mips(self.light_cubemap)

    def forward(self, target, it, denoiser=None):
        if not self.flags["mc"] and self.optimize_light:
            self.light_mips = build_mips(self.light_cubemap)
            # TODO(synk): FLAGS.camera_space_light -> light.xfm(mv) not implemented.
        # TODO(synk): geometry.tick's rasterization/shading (glctx, nvdiffrast,
        # denoiser, material MLP) has no Pallas equivalent; rendered buffers come
        # from `target`.
        loss = self.image_loss_fn(target["shaded"], target["alpha"],
                                  target["background"], target["img"])
        return loss, self.light_mips


if __name__ == "__main__":
    key = jax.random.PRNGKey(0)
    k1, k2, k3, k4, k5 = jax.random.split(key, 5)

    B, H, W, C = 2, 16, 16, 3
    CUBE_RES = 16

    # deterministic synthetic "parameters" / inputs
    light_cube = jax.random.uniform(k1, (6, CUBE_RES, CUBE_RES, 3), jnp.float32)
    target = {
        "img":        jax.random.uniform(k2, (B, H, W, C), jnp.float32),
        "background": jax.random.uniform(k3, (B, H, W, C), jnp.float32),
        "shaded":     jax.random.uniform(k4, (B, H, W, C), jnp.float32),
        "alpha":      jax.random.uniform(k5, (B, H, W, 1), jnp.float32),
    }
    flags = {"mc": False, "camera_space_light": False, "perc_patch_size": 0}

    trainer = Trainer(light_cube, optimize_light=True,
                      image_loss_fn=image_loss, flags=flags)
    loss, mips = trainer.forward(target, it=0)
    loss = jax.block_until_ready(loss)
    mips = jax.block_until_ready(mips)

    # pure-JAX reference check
    color_ref = target["shaded"] * target["alpha"] + \
        target["background"] * (1.0 - target["alpha"])
    loss_ref = jnp.mean(jnp.abs(jnp.log(color_ref + 1.0) - jnp.log(target["img"] + 1.0)))
    mips_ref = light_cube.reshape(6, CUBE_RES // 2, 2, CUBE_RES // 2, 2, 3).mean(axis=(2, 4))

    assert jnp.allclose(loss, loss_ref, atol=1e-5, rtol=1e-5), (loss, loss_ref)
    assert jnp.allclose(mips, mips_ref, atol=1e-5, rtol=1e-5)

    print("KERNEL_OK")
</pallas_src>

<mosaic_0001>
module attributes {stable_mosaic.version = 11 : i64} {
  func.func @_build_mip_kernel(%arg0: i32, %arg1: memref<1x16x48xf32, #tpu.memory_space<vmem>>, %arg2: memref<8x16xf32, #tpu.memory_space<vmem>>, %arg3: memref<48x24xf32, #tpu.memory_space<vmem>>, %arg4: memref<1x8x24xf32, #tpu.memory_space<vmem>>) attributes {dimension_semantics = [#tpu.dimension_semantics<parallel>], iteration_bounds = array<i64: 6>, scalar_prefetch = 0 : i64, scratch_operands = 0 : i64, tpu.core_type = #tpu.core_type<tc>, window_params = [{transform_indices = @transform_0, window_bounds = array<i64: 1, 16, 48>}, {pipeline_mode = #tpu.pipeline_mode<synchronous>, transform_indices = @transform_1, window_bounds = array<i64: 8, 16>}, {pipeline_mode = #tpu.pipeline_mode<synchronous>, transform_indices = @transform_2, window_bounds = array<i64: 48, 24>}, {transform_indices = @transform_3, window_bounds = array<i64: 1, 8, 24>}]} {
    %c0 = arith.constant 0 : index
    %c0_0 = arith.constant 0 : index
    %c0_1 = arith.constant 0 : index
    %0 = vector.load %arg1[%c0, %c0_0, %c0_1] : memref<1x16x48xf32, #tpu.memory_space<vmem>>, vector<1x16x48xf32>
    %1 = vector.shape_cast %0 : vector<1x16x48xf32> to vector<16x48xf32>
    %c0_2 = arith.constant 0 : index
    %c0_3 = arith.constant 0 : index
    %2 = vector.load %arg2[%c0_2, %c0_3] : memref<8x16xf32, #tpu.memory_space<vmem>>, vector<8x16xf32>
    %cst = arith.constant dense<0.000000e+00> : vector<8x48xf32>
    %3 = tpu.matmul %2, %1, %cst {dimension_numbers = #tpu.dot_dimension_numbers<[1], [0], [0], [1], [0, 0, 1, 1], [], []>} : vector<8x16xf32>, vector<16x48xf32>, vector<8x48xf32> -> vector<8x48xf32>
    %c0_4 = arith.constant 0 : index
    %c0_5 = arith.constant 0 : index
    %4 = vector.load %arg3[%c0_4, %c0_5] : memref<48x24xf32, #tpu.memory_space<vmem>>, vector<48x24xf32>
    %cst_6 = arith.constant dense<0.000000e+00> : vector<8x24xf32>
    %5 = tpu.matmul %3, %4, %cst_6 {dimension_numbers = #tpu.dot_dimension_numbers<[1], [0], [0], [1], [0, 0, 1, 1], [], []>} : vector<8x48xf32>, vector<48x24xf32>, vector<8x24xf32> -> vector<8x24xf32>
    %c0_7 = arith.constant 0 : index
    %c0_8 = arith.constant 0 : index
    %c0_9 = arith.constant 0 : index
    %6 = vector.load %arg4[%c0_7, %c0_8, %c0_9] : memref<1x8x24xf32, #tpu.memory_space<vmem>>, vector<1x8x24xf32>
    %7 = vector.shape_cast %6 : vector<1x8x24xf32> to vector<8x24xf32>
    %8 = vector.shape_cast %5 : vector<8x24xf32> to vector<1x8x24xf32>
    tpu.vector_store %arg4[%c0_7, %c0_8, %c0_9], %8 {strides = array<i32>} : memref<1x8x24xf32, #tpu.memory_space<vmem>>, vector<1x8x24xf32>,
    return
  }
  func.func @transform_0(%arg0: i32) -> (i32, i32, i32) {
    %c0_i32 = arith.constant 0 : i32
    %c0_i32_0 = arith.constant 0 : i32
    %c0_i32_1 = arith.constant 0 : i32
    return %arg0, %c0_i32, %c0_i32_0 : i32, i32, i32
  }
  func.func @transform_1(%arg0: i32) -> (i32, i32) {
    %c0_i32 = arith.constant 0 : i32
    %c0_i32_0 = arith.constant 0 : i32
    %c0_i32_1 = arith.constant 0 : i32
    return %c0_i32, %c0_i32_0 : i32, i32
  }
  func.func @transform_2(%arg0: i32) -> (i32, i32) {
    %c0_i32 = arith.constant 0 : i32
    %c0_i32_0 = arith.constant 0 : i32
    %c0_i32_1 = arith.constant 0 : i32
    return %c0_i32, %c0_i32_0 : i32, i32
  }
  func.func @transform_3(%arg0: i32) -> (i32, i32, i32) {
    %c0_i32 = arith.constant 0 : i32
    %c0_i32_0 = arith.constant 0 : i32
    %c0_i32_1 = arith.constant 0 : i32
    return %arg0, %c0_i32, %c0_i32_0 : i32, i32, i32
  }
}

</mosaic_0001>

<llo_original>
// kernel: tpu_custom_call.1
$region0: #{tpu_custom_call.1}
  #allocation0 [shape = 'u32[]', space=smem, size = 0x4, offset = 0x4, fixed_abs, tag = 'smem constant byte address 0x4 - core index']
  #allocation1 [shape = 'u32[144,128]{1,0:T(1,128)}', space=vmem, size = 0x12000, scoped, tag = 'internal scratch']
  %s0 = inlined_call_operand.hbm [shape: f32[6,16,48], index: 0, kind: input, shape index: {}]
  %s1 = inlined_call_operand.vmem [shape: f32[8,16], index: 1, kind: input, shape index: {}]
  %s2 = inlined_call_operand.vmem [shape: f32[48,24], index: 2, kind: input, shape index: {}]
  %s3 = inlined_call_operand.hbm [shape: f32[6,8,24], index: 3, kind: output, shape index: {}]
  %s4 = sld [smem:[#allocation0]]
  $region49: #{tpu_custom_call.1} parent=0
    _
  %s6 = ssub.s32 1, %s4
  %s7 = scalar_select 0, %s6, %s4
  $region1: #{tpu_custom_call.1} parent=0
    #allocation2 [shape = 'u8[16384]{0}', space=vmem, size = 0x4000, scoped, tag = 'input window, operand 0']
    #allocation3 [shape = 's32[2]{0}', space=sflag, size = 0x8, scoped, tag = 'scoped memory for tpu_custom_call.1']
    #allocation4 [shape = 's32[2]{0}', space=sflag, size = 0x8, scoped, tag = 'scoped memory for tpu_custom_call.1']
    #allocation5 [shape = 'u8[8192]{0}', space=vmem, size = 0x2000, scoped, tag = 'output window, operand 0']
    %8 = vsyncpa [#allocation3], 0
    %s9 = scalar_lea.sflag [#allocation3], 1
    %10 = vsyncpa %s9, 0
    %11 = vsyncpa [#allocation4], 0
    %s12 = scalar_lea.sflag [#allocation4], 1
    %13 = vsyncpa %s12, 0
    loop: start=0, step=1, limit=8
    $region2: #{tpu_custom_call.1} parent=1 // loop_pre_header
      _
    $region3: #{tpu_custom_call.1} parent=1 // loop_header
      %s15 = sphi 0, %s19
      %p16 = scmp.ge.s32.totalorder %s15, 8
      %s25 = sphi 0, %s27
      %s28 = sphi 0, %s25
      %s29 = sphi 0, %s28
      %s45 = sphi 0, %s29
      %s49 = sphi 0, %s49
      %s51 = sphi 0, %s49
      %s52 = sphi 0, %s51
      %s66 = sphi 0, %s52
      %s70 = sphi 0, %s70
      %s72 = sphi 0, %s70
      %s73 = sphi 0, %s72
      %s87 = sphi 0, %s73
      %s93 = sphi 0, %s95
      %s96 = sphi 0, %s93
      %s97 = sphi 0, %s96
      %s113 = sphi 0, %s97
    $region4: #{tpu_custom_call.1} parent=1 // loop_header_branch
      %18 = sbr.rel (%p16) target = $region8
    $region5: #{tpu_custom_call.1} parent=1 // loop_body
      %s20 = ssub.s32 %s15, 1
      %s21 = ssub.s32 %s15, 2
      %s22 = sadd.s32 %s15, 1
      %s23 = ssub.s32 %s15, %s22
      %p24 = scmp.eq.s32.totalorder %s23, 0
      %s26 = sadd.s32 %s25, 1
      %s27 = scalar_select %p24, %s25, %s26
      %p30 = pneg %p24
      %p31 = scmp.eq.s32.totalorder %s15, 5
      %p32 = por %p30, %p31
      %p33 = scmp.ne.s32.totalorder %s25, %s28
      %p34 = scmp.eq.s32.totalorder %s15, 0
      %p35 = por %p33, %p34
      %p36 = scmp.ne.s32.totalorder %s25, %s28
      %p37 = scmp.eq.s32.totalorder %s20, 5
      %p38 = por %p36, %p37
      %p39 = scmp.ne.s32.totalorder %s28, %s29
      %p40 = scmp.eq.s32.totalorder %s20, 0
      %p41 = por %p39, %p40
      %p42 = scmp.ne.s32.totalorder %s28, %s29
      %p43 = scmp.eq.s32.totalorder %s21, 5
      %p44 = por %p42, %p43
      %p46 = scmp.ne.s32.totalorder %s29, %s45
      %p47 = scmp.eq.s32.totalorder %s21, 0
      %p48 = por %p46, %p47
      %s50 = sadd.s32 %s49, 1
      %p53 = scmp.eq.s32.totalorder %s15, 5
      %p54 = scmp.ne.s32.totalorder %s49, %s51
      %p55 = scmp.eq.s32.totalorder %s15, 0
      %p56 = por %p54, %p55
      %p57 = scmp.ne.s32.totalorder %s49, %s51
      %p58 = scmp.eq.s32.totalorder %s20, 5
      %p59 = por %p57, %p58
      %p60 = scmp.ne.s32.totalorder %s51, %s52
      %p61 = scmp.eq.s32.totalorder %s20, 0
      %p62 = por %p60, %p61
      %p63 = scmp.ne.s32.totalorder %s51, %s52
      %p64 = scmp.eq.s32.totalorder %s21, 5
      %p65 = por %p63, %p64
      %p67 = scmp.ne.s32.totalorder %s52, %s66
      %p68 = scmp.eq.s32.totalorder %s21, 0
      %p69 = por %p67, %p68
      %s71 = sadd.s32 %s70, 1
      %p74 = scmp.eq.s32.totalorder %s15, 5
      %p75 = scmp.ne.s32.totalorder %s70, %s72
      %p76 = scmp.eq.s32.totalorder %s15, 0
      %p77 = por %p75, %p76
      %p78 = scmp.ne.s32.totalorder %s70, %s72
      %p79 = scmp.eq.s32.totalorder %s20, 5
      %p80 = por %p78, %p79
      %p81 = scmp.ne.s32.totalorder %s72, %s73
      %p82 = scmp.eq.s32.totalorder %s20, 0
      %p83 = por %p81, %p82
      %p84 = scmp.ne.s32.totalorder %s72, %s73
      %p85 = scmp.eq.s32.totalorder %s21, 5
      %p86 = por %p84, %p85
      %p88 = scmp.ne.s32.totalorder %s73, %s87
      %p89 = scmp.eq.s32.totalorder %s21, 0
      %p90 = por %p88, %p89
      %s91 = ssub.s32 %s15, %s22
      %p92 = scmp.eq.s32.totalorder %s91, 0
      %s94 = sadd.s32 %s93, 1
      %s95 = scalar_select %p92, %s93, %s94
      %p98 = pneg %p92
      %p99 = scmp.eq.s32.totalorder %s15, 5
      %p100 = por %p98, %p99
      %p101 = scmp.ne.s32.totalorder %s93, %s96
      %p102 = scmp.eq.s32.totalorder %s15, 0
      %p103 = por %p101, %p102
      %p104 = scmp.ne.s32.totalorder %s93, %s96
      %p105 = scmp.eq.s32.totalorder %s20, 5
      %p106 = por %p104, %p105
      %p107 = scmp.ne.s32.totalorder %s96, %s97
      %p108 = scmp.eq.s32.totalorder %s20, 0
      %p109 = por %p107, %p108
      %p110 = scmp.ne.s32.totalorder %s96, %s97
      %p111 = scmp.eq.s32.totalorder %s21, 5
      %p112 = por %p110, %p111
      %p114 = scmp.ne.s32.totalorder %s97, %s113
      %p115 = scmp.eq.s32.totalorder %s21, 0
      %p116 = por %p114, %p115
      %p117 = scmp.le.s32.totalorder 1, %s15
      %p118 = scmp.lt.s32.totalorder %s15, 7
      %p119 = pnand %p117, %p118
      %p120 = pneg %p119
      // Predicated region
      $region9: #{tpu_custom_call.1} parent=5 // pred_check
        _
      $region10: #{tpu_custom_call.1} parent=5 // pred_check_branch
        %122 = sbr.rel (%p119) target = $region12
      $region11: #{tpu_custom_call.1} parent=5 // pred_region
        %s123 = ssub.s32 %s15, 1
        // Predicated region
        $region13: #{tpu_custom_call.1} parent=11 // pred_check
          %p124 = pneg %p62
        $region14: #{tpu_custom_call.1} parent=11 // pred_check_branch
          %126 = sbr.rel (%p124) target = $region16
        $region15: #{tpu_custom_call.1} parent=11 // pred_region
          _
        $region16: #{tpu_custom_call.1} parent=11 // pred_fallthru
          _
        // Predicated region
        $region17: #{tpu_custom_call.1} parent=11 // pred_check
          %p127 = pneg %p83
        $region18: #{tpu_custom_call.1} parent=11 // pred_check_branch
          %129 = sbr.rel (%p127) target = $region20
        $region19: #{tpu_custom_call.1} parent=11 // pred_region
          _
        $region20: #{tpu_custom_call.1} parent=11 // pred_fallthru
          _
      $region12: #{tpu_custom_call.1} parent=5 // pred_fallthru
        _
      %p130 = scmp.lt.s32.totalorder %s15, 6
      // Predicated region
      $region21: #{tpu_custom_call.1} parent=5 // pred_check
        %p131 = pneg %p130
      $region22: #{tpu_custom_call.1} parent=5 // pred_check_branch
        %133 = sbr.rel (%p131) target = $region24
      $region23: #{tpu_custom_call.1} parent=5 // pred_region
        // Predicated region
        $region25: #{tpu_custom_call.1} parent=23 // pred_check
          %p134 = pneg %p35
        $region26: #{tpu_custom_call.1} parent=23 // pred_check_branch
          %136 = sbr.rel (%p134) target = $region28
        $region27: #{tpu_custom_call.1} parent=23 // pred_region
          %s137 = sand.u32 %s25, 1
          %s138 = scalar_lea.sflag [#allocation3], %s137
          %s139 = sand.u32 %s25, 1
          %s140 = smul.addr %s139, 16
          %s141 = scalar_lea.vmem [#allocation2], %s140
          %s143 = ssub.s32 256, 256
          %144 = vsyncadd %s138, %s143
          %s145 = smul.addr %s15, 2
          %s146 = smul.addr %s145, 128
          %s147 = scalar_lea.hbm %s0, %s146
          %s148 = sshll.u32 %s141, 4
          %s149 = int_to_ptr.vmem [resolvable:$true] %s148
          %154 = dma.hbm_to_vmem [thread:$0]  %s147, 256, %s149, %s138, 128, 128, 8
        $region28: #{tpu_custom_call.1} parent=23 // pred_fallthru
          _
      $region24: #{tpu_custom_call.1} parent=5 // pred_fallthru
        _
      %p155 = scmp.le.s32.totalorder 1, %s15
      %p156 = scmp.lt.s32.totalorder %s15, 7
      %p157 = pnand %p155, %p156
      %p158 = pneg %p157
      // Predicated region
      $region29: #{tpu_custom_call.1} parent=5 // pred_check
        _
      $region30: #{tpu_custom_call.1} parent=5 // pred_check_branch
        %160 = sbr.rel (%p157) target = $region32
      $region31: #{tpu_custom_call.1} parent=5 // pred_region
        %s161 = ssub.s32 %s15, 1
        %s162 = sand.u32 %s28, 1
        %s163 = scalar_lea.sflag [#allocation3], %s162
        %s164 = sand.u32 %s28, 1
        %s165 = smul.addr %s164, 16
        %s166 = scalar_lea.vmem [#allocation2], %s165
        // Predicated region
        $region33: #{tpu_custom_call.1} parent=31 // pred_check
          %p167 = pneg %p41
        $region34: #{tpu_custom_call.1} parent=31 // pred_check_branch
          %169 = sbr.rel (%p167) target = $region36
        $region35: #{tpu_custom_call.1} parent=31 // pred_region
          %170 = dma.done %s163, 256
        $region36: #{tpu_custom_call.1} parent=31 // pred_fallthru
          _
        %s171 = sand.u32 %s28, 1
        %s172 = scalar_lea.sflag [#allocation3], %s171
        %s173 = sand.u32 %s28, 1
        %s174 = smul.addr %s173, 16
        %s175 = scalar_lea.vmem [#allocation2], %s174
        %p176 = pneg %p41
        %p177 = pneg %p38
        %p178 = pneg %p62
        %p179 = pneg %p59
        %p180 = pneg %p83
        %p181 = pneg %p80
        %p182 = pneg %p109
        %p183 = pneg %p106
        %s184 = sand.u32 %s96, 1
        %s185 = scalar_lea.sflag [#allocation4], %s184
        %s186 = sand.u32 %s96, 1
        %s187 = smul.addr %s186, 8
        %s188 = scalar_lea.vmem [#allocation5], %s187
        %v189 = vld [vmem:[%s166] sm:$0xff]
        %v190 = vld [vmem:[%s166 + $0x8] sm:$0xff]
        %v191 = vld [vmem:[%s1] sm:$0xff]
        %vm192 = vcmask 130048
        %v194 = vsel %vm192, %v191, 0
        %196 = vmatprep.subr.mxu0 0.0
        %197 = vmatpush1.msra.mxu0 %v189
        %198 = vmatprep.subr.mxu0 0.0
        %199 = vmatpush1.msra.mxu0 %v190
        %200 = vmatprep.subr.mxu0 0.0
        %201 = vmatpush1.msra.mxu0 0.0
        %202 = vmatprep.subr.mxu0 0.0
        %203 = vmatpush1.msra.mxu0 0.0
        %204 = vmatprep.subr.mxu0 0.0
        %205 = vmatpush1.msra.mxu0 0.0
        %206 = vmatprep.subr.mxu0 0.0
        %207 = vmatpush1.msra.mxu0 0.0
        %208 = vmatprep.subr.mxu0 0.0
        %209 = vmatpush1.msra.mxu0 0.0
        %210 = vmatprep.subr.mxu0 0.0
        %211 = vmatpush1.msra.mxu0 0.0
        %212 = vmatprep.subr.mxu0 0.0
        %213 = vmatpush1.msra.mxu0 0.0
        %214 = vmatprep.subr.mxu0 0.0
        %215 = vmatpush1.msra.mxu0 0.0
        %216 = vmatprep.subr.mxu0 0.0
        %217 = vmatpush1.msra.mxu0 0.0
        %218 = vmatprep.subr.mxu0 0.0
        %219 = vmatpush1.msra.mxu0 0.0
        %220 = vmatprep.subr.mxu0 0.0
        %221 = vmatpush1.msra.mxu0 0.0
        %222 = vmatprep.subr.mxu0 0.0
        %223 = vmatpush1.msra.mxu0 0.0
        %224 = vmatprep.subr.mxu0 0.0
        %225 = vmatpush1.msra.mxu0 0.0
        %226 = vmatprep.subr.mxu0 0.0
        %227 = vmatpush1.msra.mxu0 0.0
        %228 = vmatprep.subr.mxu0 0.0
        %229 = vmatpush1.msra.mxu0 0.0
        %230 = vmatprep.subr.mxu0 0.0
        %231 = vmatpush1.msra.mxu0 0.0
        %232 = vmatprep.subr.mxu0 0.0
        %233 = vmatpush1.msra.mxu0 0.0
        %234 = vmatprep.subr.mxu0 0.0
        %235 = vmatpush1.msra.mxu0 0.0
        %236 = vmatprep.subr.mxu0 0.0
        %237 = vmatpush1.msra.mxu0 0.0
        %238 = vmatprep.subr.mxu0 0.0
        %239 = vmatpush1.msra.mxu0 0.0
        %240 = vmatprep.subr.mxu0 0.0
        %241 = vmatpush1.msra.mxu0 0.0
        %242 = vmatprep.subr.mxu0 0.0
        %243 = vmatpush1.msra.mxu0 0.0
        %244 = vmatprep.subr.mxu0 0.0
        %245 = vmatpush1.msra.mxu0 0.0
        %246 = vmatprep.subr.mxu0 0.0
        %247 = vmatpush1.msra.mxu0 0.0
        %248 = vmatprep.subr.mxu0 0.0
        %249 = vmatpush1.msra.mxu0 0.0
        %250 = vmatprep.subr.mxu0 0.0
        %251 = vmatpush1.msra.mxu0 0.0
        %252 = vmatprep.subr.mxu0 0.0
        %253 = vmatpush1.msra.mxu0 0.0
        %254 = vmatprep.subr.mxu0 0.0
        %255 = vmatpush1.msra.mxu0 0.0
        %256 = vmatprep.subr.mxu0 0.0
        %257 = vmatpush1.msra.mxu0 0.0
        %258 = vmatprep.subr.mxu0 0.0
        %259 = vmatpush1.msra.mxu0 0.0
        %260 = vmatprep.mubr.f32.mxu0 0.0
        %261 = vmatmul.mubr.f32.gmra.mrb[0].mxu0 %v194
        %v262 = vpop.f32.mrb[0].mxu0
        %v263 = vadd.f32 0.0, %v262
        %v264 = vpop.f32.mrb[0].mxu0
        %265 = vdwg.mxu0
        %v266 = vld [vmem:[%s2] sm:$0xff]
        %v267 = vld [vmem:[%s2 + $0x8] sm:$0xff]
        %v268 = vld [vmem:[%s2 + $0x10] sm:$0xff]
        %v269 = vld [vmem:[%s2 + $0x18] sm:$0xff]
        %v270 = vld [vmem:[%s2 + $0x20] sm:$0xff]
        %v271 = vld [vmem:[%s2 + $0x28] sm:$0xff]
        %vm272 = vcmask 392192
        %v274 = vsel %vm272, %v263, 0
        %276 = vmatprep.subr.mxu0 0.0
        %277 = vmatpush1.msra.mxu0 %v266
        %278 = vmatprep.subr.mxu0 0.0
        %279 = vmatpush1.msra.mxu0 %v267
        %280 = vmatprep.subr.mxu0 0.0
        %281 = vmatpush1.msra.mxu0 %v268
        %282 = vmatprep.subr.mxu0 0.0
        %283 = vmatpush1.msra.mxu0 %v269
        %284 = vmatprep.subr.mxu0 0.0
        %285 = vmatpush1.msra.mxu0 %v270
        %286 = vmatprep.subr.mxu0 0.0
        %287 = vmatpush1.msra.mxu0 %v271
        %288 = vmatprep.subr.mxu0 0.0
        %289 = vmatpush1.msra.mxu0 0.0
        %290 = vmatprep.subr.mxu0 0.0
        %291 = vmatpush1.msra.mxu0 0.0
        %292 = vmatprep.subr.mxu0 0.0
        %293 = vmatpush1.msra.mxu0 0.0
        %294 = vmatprep.subr.mxu0 0.0
        %295 = vmatpush1.msra.mxu0 0.0
        %296 = vmatprep.subr.mxu0 0.0
        %297 = vmatpush1.msra.mxu0 0.0
        %298 = vmatprep.subr.mxu0 0.0
        %299 = vmatpush1.msra.mxu0 0.0
        %300 = vmatprep.subr.mxu0 0.0
        %301 = vmatpush1.msra.mxu0 0.0
        %302 = vmatprep.subr.mxu0 0.0
        %303 = vmatpush1.msra.mxu0 0.0
        %304 = vmatprep.subr.mxu0 0.0
        %305 = vmatpush1.msra.mxu0 0.0
        %306 = vmatprep.subr.mxu0 0.0
        %307 = vmatpush1.msra.mxu0 0.0
        %308 = vmatprep.subr.mxu0 0.0
        %309 = vmatpush1.msra.mxu0 0.0
        %310 = vmatprep.subr.mxu0 0.0
        %311 = vmatpush1.msra.mxu0 0.0
        %312 = vmatprep.subr.mxu0 0.0
        %313 = vmatpush1.msra.mxu0 0.0
        %314 = vmatprep.subr.mxu0 0.0
        %315 = vmatpush1.msra.mxu0 0.0
        %316 = vmatprep.subr.mxu0 0.0
        %317 = vmatpush1.msra.mxu0 0.0
        %318 = vmatprep.subr.mxu0 0.0
        %319 = vmatpush1.msra.mxu0 0.0
        %320 = vmatprep.subr.mxu0 0.0
        %321 = vmatpush1.msra.mxu0 0.0
        %322 = vmatprep.subr.mxu0 0.0
        %323 = vmatpush1.msra.mxu0 0.0
        %324 = vmatprep.subr.mxu0 0.0
        %325 = vmatpush1.msra.mxu0 0.0
        %326 = vmatprep.subr.mxu0 0.0
        %327 = vmatpush1.msra.mxu0 0.0
        %328 = vmatprep.subr.mxu0 0.0
        %329 = vmatpush1.msra.mxu0 0.0
        %330 = vmatprep.subr.mxu0 0.0
        %331 = vmatpush1.msra.mxu0 0.0
        %332 = vmatprep.subr.mxu0 0.0
        %333 = vmatpush1.msra.mxu0 0.0
        %334 = vmatprep.subr.mxu0 0.0
        %335 = vmatpush1.msra.mxu0 0.0
        %336 = vmatprep.subr.mxu0 0.0
        %337 = vmatpush1.msra.mxu0 0.0
        %338 = vmatprep.subr.mxu0 0.0
        %339 = vmatpush1.msra.mxu0 0.0
        %340 = vmatprep.mubr.f32.mxu0 0.0
        %341 = vmatmul.mubr.f32.gmra.mrb[0].mxu0 %v274
        %v342 = vpop.f32.mrb[0].mxu0
        %v343 = vadd.f32 0.0, %v342
        %v344 = vpop.f32.mrb[0].mxu0
        %345 = vdwg.mxu0
        %vm346 = vcmask 195584
        %347 = vst.msk [vmem:[%s188] sm:$0xff] %vm346, %v343
        %s348 = sand.u32 %s96, 1
        %s349 = scalar_lea.sflag [#allocation4], %s348
        %s350 = sand.u32 %s96, 1
        %s351 = smul.addr %s350, 8
        %s352 = scalar_lea.vmem [#allocation5], %s351
        // Predicated region
        $region37: #{tpu_custom_call.1} parent=31 // pred_check
          %p353 = pneg %p106
        $region38: #{tpu_custom_call.1} parent=31 // pred_check_branch
          %355 = sbr.rel (%p353) target = $region40
        $region39: #{tpu_custom_call.1} parent=31 // pred_region
          %s357 = ssub.s32 128, 128
          %358 = vsyncadd %s349, %s357
          %s359 = smul.addr %s20, 128
          %s360 = scalar_lea.hbm %s3, %s359
          %s362 = sshll.u32 %s352, 4
          %s363 = int_to_ptr.vmem [resolvable:$true] %s362
          %365 = dma.vmem_to_hbm [thread:$0]  %s363, 128, %s360, %s349
        $region40: #{tpu_custom_call.1} parent=31 // pred_fallthru
          _
      $region32: #{tpu_custom_call.1} parent=5 // pred_fallthru
        _
      %p366 = scmp.le.s32.totalorder 2, %s15
      // Predicated region
      $region41: #{tpu_custom_call.1} parent=5 // pred_check
        %p367 = pneg %p366
      $region42: #{tpu_custom_call.1} parent=5 // pred_check_branch
        %369 = sbr.rel (%p367) target = $region44
      $region43: #{tpu_custom_call.1} parent=5 // pred_region
        %s370 = ssub.s32 %s15, 2
        // Predicated region
        $region45: #{tpu_custom_call.1} parent=43 // pred_check
          %p371 = pneg %p112
        $region46: #{tpu_custom_call.1} parent=43 // pred_check_branch
          %373 = sbr.rel (%p371) target = $region48
        $region47: #{tpu_custom_call.1} parent=43 // pred_region
          %s374 = sand.u32 %s97, 1
          %s375 = scalar_lea.sflag [#allocation4], %s374
          %s376 = sand.u32 %s97, 1
          %s377 = smul.addr %s376, 8
          %s378 = scalar_lea.vmem [#allocation5], %s377
          %379 = dma.done %s375, 128
        $region48: #{tpu_custom_call.1} parent=43 // pred_fallthru
          _
      $region44: #{tpu_custom_call.1} parent=5 // pred_fallthru
        _
    $region6: #{tpu_custom_call.1} parent=1 // loop_footer
      %s19 = sadd.s32 1, %s15
    $region7: #{tpu_custom_call.1} parent=1 // loop_footer_branch
      %14 = sbr.rel target = $region3
    $region8: #{tpu_custom_call.1} parent=1 // loop_exit
      _
    %380 = vsyncpa [#allocation3], 1
    %s381 = scalar_lea.sflag [#allocation3], 1
    %382 = vsyncpa %s381, 1
    %383 = vsyncpa [#allocation4], 1
    %s384 = scalar_lea.sflag [#allocation4], 1
    %385 = vsyncpa %s384, 1

</llo_original>
